<compile_context>
chip_gen: v5e
topology: v5e:2x2
jax: 0.10.0
libtpu: 0.0.40
codegen_flags: <defaults>
</compile_context>

<pallas_src>
import math
import functools

import jax
import jax.numpy as jnp
from jax.experimental import pallas as pl
from jax.experimental.pallas import tpu as pltpu


def _pick_pixel_tile(n_pix, max_tile):
    """Whole pixel axis if it fits, else a lane-aligned (multiple-of-128) max tile."""
    if n_pix <= max_tile:
        return n_pix
    return max_tile  # caller passes a multiple of 128; ragged last tile is handled


def _pick_depth_tile(n_depth, max_td=8):
    """Largest divisor of D that is <= max_td (keeps every store sublane-aligned)."""
    for td in range(min(n_depth, max_td), 0, -1):
        if n_depth % td == 0:
            return td
    return 1


# ---------------------------------------------------------------------------
# Pallas kernel 1: feature extraction = 1x1 conv (+bias) + ReLU
#   x (1, Cin, TP), w (F, Cin), b (F, 1)  ->  o (1, F, TP)   (pixels on lanes)
#   Cin is tiny (e.g. 3): unrolled VPU FMAs avoid MXU drain latency (v5e), and
#   are harmless on v6e/v7x; fall back to an MXU dot for larger Cin.
# ---------------------------------------------------------------------------
def _feat_kernel(x_ref, w_ref, b_ref, o_ref):
    x = x_ref[0]                                   # (Cin, TP)
    w = w_ref[...]                                 # (F, Cin)
    b = b_ref[...]                                 # (F, 1)
    n_in = x.shape[0]
    if n_in <= 8:
        acc = jnp.zeros((w.shape[0], x.shape[1]), jnp.float32) + b
        for c in range(n_in):                      # static unroll, Cin small
            acc = acc + w[:, c:c + 1] * x[c:c + 1, :]
        y = acc
    else:
        y = jnp.dot(w, x, preferred_element_type=jnp.float32) + b
    o_ref[0] = jnp.maximum(y, 0.0)


def feature_extraction(frames_nchw, w_fc, b_f, *, pixel_tile=8192):
    """frames (N, Cin, H, W) -> features (N, F, H*W), channel-major / pixels-last."""
    N, C, H, W = frames_nchw.shape
    F = w_fc.shape[0]
    P = H * W
    TP = _pick_pixel_tile(P, pixel_tile)
    x = frames_nchw.reshape(N, C, P)  # no transpose: NCHW is already channel-major

    blk_bytes = 2 * (C * TP + F * TP) * 4 + (F * (C + 1)) * 4
    vmem_limit = int(min(max(4 * blk_bytes, 16 << 20), 32 << 20))

    cost = pl.CostEstimate(
        flops=2 * N * P * C * F,
        transcendentals=0,
        bytes_accessed=4 * (N * P * (C + F) + F * (C + 1)),
    )
    out = pl.pallas_call(
        _feat_kernel,
        out_shape=jax.ShapeDtypeStruct((N, F, P), jnp.float32),
        # pixel axis leads: many blocks -> balanced megacore sharding on v7x
        grid=(pl.cdiv(P, TP), N),
        in_specs=[
            pl.BlockSpec((1, C, TP), lambda p, n: (n, 0, p)),
            pl.BlockSpec((F, C), lambda p, n: (0, 0)),
            pl.BlockSpec((F, 1), lambda p, n: (0, 0)),
        ],
        out_specs=pl.BlockSpec((1, F, TP), lambda p, n: (n, 0, p)),
        compiler_params=pltpu.CompilerParams(
            dimension_semantics=("parallel", "parallel"),
            vmem_limit_bytes=vmem_limit),
        cost_estimate=cost,
    )(x, w_fc, b_f.reshape(F, 1))
    return out  # (N, F, P)


# ---------------------------------------------------------------------------
# Pallas kernel 2: fused plane-sweep cost volume + softmax over depth
#   ref    (C, TP)            f32  reference features, pixels on lanes
#   warped (S, TD, C, TP)     bf16 TD depth planes per grid step
#   out    (D, TP)            f32  resident across the depth grid axis
# ---------------------------------------------------------------------------
def _costv_softmax_kernel(ref_ref, warp_ref, o_ref, *, n_src, td, inv_sigma, bv_log):
    dg = pl.program_id(1)
    ref = ref_ref[...]                                  # (C, TP) f32
    n_chan = ref.shape[0]
    n_pix = ref.shape[1]

    warp = warp_ref[...].astype(jnp.float32)            # (S, TD, C, TP)
    diff = warp - ref[None, None, :, :]
    dsq = diff * diff

    if n_chan % 8 == 0:
        # Fold all (src, depth) channel reductions into one MXU call via a static
        # block-diagonal ones selector: (S*TD, S*TD*C) @ (S*TD*C, TP) -> (S*TD, TP).
        groups = n_src * td
        dsq_flat = dsq.reshape(groups * n_chan, n_pix)
        rows = jax.lax.broadcasted_iota(jnp.int32, (groups, groups * n_chan), 0)
        cols = jax.lax.broadcasted_iota(jnp.int32, (groups, groups * n_chan), 1)
        sel = (cols // n_chan == rows).astype(jnp.float32)
        sq_norm = jnp.dot(sel, dsq_flat,
                          preferred_element_type=jnp.float32,
                          precision=jax.lax.Precision.HIGHEST)       # (S*TD, TP)
        l2 = jnp.sqrt(jnp.maximum(sq_norm, 0.0)).reshape(n_src, td, n_pix)
    else:
        # fallback: sublane (XLU) channel reduce when the reshape is not tile-aligned
        sq_norm = jnp.sum(dsq, axis=2)                               # (S, TD, TP)
        l2 = jnp.sqrt(jnp.maximum(sq_norm, 0.0))

    cost = jnp.sum(l2, axis=0)                                       # (TD, TP)

    # one sublane-aligned lane-dense store of TD rows of -cost/sigma
    row0 = pl.multiple_of(dg * td, td)
    o_ref[pl.ds(row0, td), :] = -(cost * inv_sigma)

    @pl.when(dg == pl.num_programs(1) - 1)
    def _():
        neg = o_ref[...]                                 # (D, TP): all rows written
        m = jnp.max(neg, axis=0, keepdims=True)          # sublane reduce over depth
        e = jnp.exp(neg - m)
        ssum = jnp.sum(e, axis=0, keepdims=True)
        if bv_log:
            o_ref[...] = (neg - m) - jnp.log(ssum)
        else:
            # exact reciprocal keeps per-pixel sum-over-depth == 1 to tight tolerance
            o_ref[...] = e * pl.reciprocal(ssum)


def cost_volume_softmax(ref_cp, warped_sdcp, sigma_soft_max, bv_log, *,
                        pixel_tile=2048, depth_tile=8):
    S, D, C, P = warped_sdcp.shape
    TP = _pick_pixel_tile(P, pixel_tile)
    TD = _pick_depth_tile(D, depth_tile)
    kernel = functools.partial(
        _costv_softmax_kernel, n_src=S, td=TD,
        inv_sigma=1.0 / float(sigma_soft_max), bv_log=bv_log)

    # explicit VMEM budget: double-buffered blocks + f32 elementwise temporaries
    warp_block = S * TD * C * TP * warped_sdcp.dtype.itemsize
    ref_block = C * TP * 4
    out_block = D * TP * 4
    est = 2 * (warp_block + ref_block + out_block) + 3 * (S * TD * C * TP * 4)
    vmem_limit = int(min(max(est + (8 << 20), 32 << 20), 48 << 20))

    bytes_in = int(S * D * C * P * warped_sdcp.dtype.itemsize + C * P * 4 + D * P * 4)
    cost = pl.CostEstimate(
        flops=int(S * D * P * (4 * C + 2) + 6 * D * P),
        transcendentals=int(S * D * P + D * P),
        bytes_accessed=bytes_in,
    )
    # TODO(synk): if the warped DMA is still exposed on v7x, add
    # pipeline_mode=pl.Buffered(3) on the warped BlockSpec (VMEM budget allows it).
    return pl.pallas_call(
        kernel,
        out_shape=jax.ShapeDtypeStruct((D, P), jnp.float32),
        grid=(pl.cdiv(P, TP), D // TD),
        in_specs=[
            pl.BlockSpec((C, TP), lambda p, d: (0, p)),
            pl.BlockSpec((S, TD, C, TP), lambda p, d: (0, d, 0, p)),
        ],
        out_specs=pl.BlockSpec((D, TP), lambda p, d: (0, p)),
        compiler_params=pltpu.CompilerParams(
            dimension_semantics=("parallel", "arbitrary"),
            vmem_limit_bytes=vmem_limit),
        cost_estimate=cost,
    )(ref_cp, warped_sdcp)


# ---------------------------------------------------------------------------
# Plane-sweep warping (homography + bilinear sampling).  Data-dependent gather,
# kept in plain JAX, but done channels-last so each tap is one contiguous-row gather;
# results are cast to bf16 immediately so stack/transpose/HBM-materialization of the
# large (S, D, F, P) tensor is done in bf16 (half the HBM traffic into kernel 2).
# TODO(synk): in-kernel bilinear grid_sample (gather) not expressed in Pallas; fusing
# it into kernel 2 (precomputed indices + weights via scalar prefetch) would remove
# the (S, D, F, P) HBM round-trip entirely.
# ---------------------------------------------------------------------------
def _bilinear_sample_rows(feat_pf, u, v, H, W):
    """feat_pf: (H*W, F) channels-last; u, v: (P,) sample coords. Returns (P, F)."""
    u0 = jnp.floor(u)
    v0 = jnp.floor(v)
    u1 = u0 + 1.0
    v1 = v0 + 1.0
    wu1 = u - u0
    wu0 = 1.0 - wu1
    wv1 = v - v0
    wv0 = 1.0 - wv1

    def gather(ui, vi):
        valid = (ui >= 0) & (ui <= W - 1) & (vi >= 0) & (vi <= H - 1)
        uc = jnp.clip(ui, 0, W - 1).astype(jnp.int32)
        vc = jnp.clip(vi, 0, H - 1).astype(jnp.int32)
        vals = feat_pf[vc * W + uc]                      # (P, F) contiguous-row gather
        return jnp.where(valid[:, None], vals, 0.0)

    return (gather(u0, v0) * (wu0 * wv0)[:, None]
            + gather(u1, v0) * (wu1 * wv0)[:, None]
            + gather(u0, v1) * (wu0 * wv1)[:, None]
            + gather(u1, v1) * (wu1 * wv1)[:, None])     # (P, F)


def warp_src_to_ref(feat_src_pf, K, Kinv, R, t, d_candi, H, W):
    ys, xs = jnp.meshgrid(jnp.arange(H, dtype=jnp.float32),
                          jnp.arange(W, dtype=jnp.float32), indexing="ij")
    pix = jnp.stack([xs.ravel(), ys.ravel(), jnp.ones(H * W, jnp.float32)], axis=0)  # (3, P)
    rays = Kinv @ pix                                    # (3, P), z = 1
    warped = []
    for d in d_candi:                                    # static over depth candidates
        X = rays * d                                     # 3D point at depth d in ref frame
        Xs = R @ X + t[:, None]                          # into src frame
        p = K @ Xs
        z = jnp.where(jnp.abs(p[2]) < 1e-6, 1e-6, p[2])
        u = p[0] / z
        v = p[1] / z
        samp = _bilinear_sample_rows(feat_src_pf, u, v, H, W)   # (P, F) f32
        warped.append(samp.astype(jnp.bfloat16))               # cast before stacking
    w = jnp.stack(warped, axis=0)                        # (D, P, F) bf16
    return jnp.transpose(w, (0, 2, 1))                   # (D, F, P) bf16, channel-major


# ---------------------------------------------------------------------------
# baseline0.forward equivalent
# ---------------------------------------------------------------------------
def baseline0_forward(ref_frame, src_frames, src_cam_poses, cam_intrinsics,
                      d_candi, sigma_soft_max, feat_w, feat_b,
                      BV_log=False, normalize=True, BV_predict=None):
    # frames_ = cat(src_frames + [ref_frame], dim=0)
    frames_ = jnp.concatenate(list(src_frames) + [ref_frame], axis=0)   # (N, Cin, H, W)
    N, C_in, H, W = frames_.shape
    S = len(src_frames)
    D = len(d_candi)

    # TODO(synk): force_img_dw_rate avg_pool2d and use_img_intensity branches skipped (defaults off).
    features_ = feature_extraction(frames_, feat_w, feat_b)             # (N, F, P)

    feat_ref_cp = features_[-1]                                         # (F, P) — kernel-2 layout
    feats_src_pf = [jnp.transpose(features_[s], (1, 0)) for s in range(S)]  # (P, F) for row gathers

    Rs = [pose[:3, :3] for pose in src_cam_poses]
    ts = [pose[:3, 3] for pose in src_cam_poses]
    K = cam_intrinsics["intrinsic_M"]
    Kinv = jnp.linalg.inv(K)

    # (S, D, F, P) bf16 — stack/transpose already in bf16 (dominant HBM tensor halved)
    # TODO(synk): bf16 warped storage differs from the f32 PyTorch baseline at ~1e-3 rel.
    warped = jnp.stack(
        [warp_src_to_ref(feats_src_pf[s], K, Kinv, Rs[s], ts[s], d_candi, H, W)
         for s in range(S)],
        axis=0,
    )

    bv_dp = cost_volume_softmax(feat_ref_cp, warped, sigma_soft_max, BV_log)  # (D, P)
    BV = bv_dp.reshape(1, D, H, W)                                      # no transpose needed

    if BV_predict is not None:
        if not BV_log:
            BV = BV * BV_predict
            BV = BV / jnp.sum(BV, axis=1, keepdims=True)
        else:
            BV = BV + BV_predict
            if normalize:
                BV = jax.nn.log_softmax(BV, axis=1)
    return BV


if __name__ == "__main__":
    key = jax.random.PRNGKey(0)
    H = W = 16
    C_in = 3
    F_feat = 32
    n_src = 2
    D = 8
    sigma_soft_max = 10.0

    k1, k2, k3 = jax.random.split(key, 3)
    ref_frame = jax.random.normal(k1, (1, C_in, H, W), jnp.float32)
    src_frames = [
        jax.random.normal(jax.random.fold_in(k2, i), (1, C_in, H, W), jnp.float32)
        for i in range(n_src)
    ]

    # deterministic feature-extractor params (1x1 conv, init like baseline0.reset())
    # stored as (F, Cin) so the kernel computes w @ x directly (pixels on lanes).
    fan = 1 * 1 * F_feat
    feat_w = jax.random.normal(k3, (F_feat, C_in), jnp.float32) * math.sqrt(2.0 / fan)
    feat_b = jnp.zeros((F_feat,), jnp.float32)

    # camera intrinsics
    hfov = vfov = 60.0
    fx = (W / 2.0) / math.tan(math.radians(hfov) / 2.0)
    fy = (H / 2.0) / math.tan(math.radians(vfov) / 2.0)
    K = jnp.array([[fx, 0.0, (W - 1) / 2.0],
                   [0.0, fy, (H - 1) / 2.0],
                   [0.0, 0.0, 1.0]], jnp.float32)
    cam_intrinsics = {"hfov": hfov, "vfov": vfov, "intrinsic_M": K}

    d_candi = [1.0 + 0.5 * i for i in range(D)]

    # relative camera poses of src views w.r.t. the reference view (4x4)
    def make_pose(theta, tx):
        c, s = math.cos(theta), math.sin(theta)
        Rm = jnp.array([[c, 0.0, s], [0.0, 1.0, 0.0], [-s, 0.0, c]], jnp.float32)
        t = jnp.array([tx, 0.0, 0.0], jnp.float32)
        M = jnp.eye(4, dtype=jnp.float32)
        return M.at[:3, :3].set(Rm).at[:3, 3].set(t)

    src_cam_poses = [make_pose(0.02, 0.1), make_pose(-0.02, -0.1)]

    BV = baseline0_forward(ref_frame, src_frames, src_cam_poses, cam_intrinsics,
                           d_candi, sigma_soft_max, feat_w, feat_b,
                           BV_log=False, normalize=True, BV_predict=None)
    BV = jax.block_until_ready(BV)

    assert BV.shape == (1, D, H, W), BV.shape
    assert bool(jnp.all(jnp.isfinite(BV)))
    # softmax over depth dim must sum to 1 per pixel
    assert bool(jnp.allclose(jnp.sum(BV, axis=1), 1.0, atol=1e-4))
    print("KERNEL_OK")
</pallas_src>

<mosaic_0001>
module attributes {stable_mosaic.version = 11 : i64} {
  func.func @_feat_kernel(%arg0: i32, %arg1: i32, %arg2: memref<1x3x256xf32, #tpu.memory_space<vmem>>, %arg3: memref<32x3xf32, #tpu.memory_space<vmem>>, %arg4: memref<32x1xf32, #tpu.memory_space<vmem>>, %arg5: memref<1x32x256xf32, #tpu.memory_space<vmem>>) attributes {dimension_semantics = [#tpu.dimension_semantics<parallel>, #tpu.dimension_semantics<parallel>], iteration_bounds = array<i64: 1, 3>, scalar_prefetch = 0 : i64, scratch_operands = 0 : i64, tpu.core_type = #tpu.core_type<tc>, window_params = [{transform_indices = @transform_0, window_bounds = array<i64: 1, 3, 256>}, {pipeline_mode = #tpu.pipeline_mode<synchronous>, transform_indices = @transform_1, window_bounds = array<i64: 32, 3>}, {pipeline_mode = #tpu.pipeline_mode<synchronous>, transform_indices = @transform_2, window_bounds = array<i64: 32, 1>}, {transform_indices = @transform_3, window_bounds = array<i64: 1, 32, 256>}]} {
    %c0 = arith.constant 0 : index
    %c0_0 = arith.constant 0 : index
    %c0_1 = arith.constant 0 : index
    %0 = vector.load %arg2[%c0, %c0_0, %c0_1] : memref<1x3x256xf32, #tpu.memory_space<vmem>>, vector<1x3x256xf32>
    %1 = vector.shape_cast %0 : vector<1x3x256xf32> to vector<3x256xf32>
    %c0_2 = arith.constant 0 : index
    %c0_3 = arith.constant 0 : index
    %2 = vector.load %arg3[%c0_2, %c0_3] : memref<32x3xf32, #tpu.memory_space<vmem>>, vector<32x3xf32>
    %c0_4 = arith.constant 0 : index
    %c0_5 = arith.constant 0 : index
    %3 = vector.load %arg4[%c0_4, %c0_5] : memref<32x1xf32, #tpu.memory_space<vmem>>, vector<32x1xf32>
    %cst = arith.constant 0.000000e+00 : f32
    %4 = vector.broadcast %cst : f32 to vector<32x256xf32>
    %5 = vector.broadcast %3 : vector<32x1xf32> to vector<32x256xf32>
    %6 = arith.addf %4, %5 : vector<32x256xf32>
    %7 = vector.extract_strided_slice %2 {offsets = [0, 0], sizes = [32, 1], strides = [1, 1]} : vector<32x3xf32> to vector<32x1xf32>
    %8 = vector.extract_strided_slice %1 {offsets = [0, 0], sizes = [1, 256], strides = [1, 1]} : vector<3x256xf32> to vector<1x256xf32>
    %9 = vector.broadcast %7 : vector<32x1xf32> to vector<32x256xf32>
    %10 = vector.broadcast %8 : vector<1x256xf32> to vector<32x256xf32>
    %11 = arith.mulf %9, %10 : vector<32x256xf32>
    %12 = arith.addf %6, %11 : vector<32x256xf32>
    %13 = vector.extract_strided_slice %2 {offsets = [0, 1], sizes = [32, 1], strides = [1, 1]} : vector<32x3xf32> to vector<32x1xf32>
    %14 = vector.extract_strided_slice %1 {offsets = [1, 0], sizes = [1, 256], strides = [1, 1]} : vector<3x256xf32> to vector<1x256xf32>
    %15 = vector.broadcast %13 : vector<32x1xf32> to vector<32x256xf32>
    %16 = vector.broadcast %14 : vector<1x256xf32> to vector<32x256xf32>
    %17 = arith.mulf %15, %16 : vector<32x256xf32>
    %18 = arith.addf %12, %17 : vector<32x256xf32>
    %19 = vector.extract_strided_slice %2 {offsets = [0, 2], sizes = [32, 1], strides = [1, 1]} : vector<32x3xf32> to vector<32x1xf32>
    %20 = vector.extract_strided_slice %1 {offsets = [2, 0], sizes = [1, 256], strides = [1, 1]} : vector<3x256xf32> to vector<1x256xf32>
    %21 = vector.broadcast %19 : vector<32x1xf32> to vector<32x256xf32>
    %22 = vector.broadcast %20 : vector<1x256xf32> to vector<32x256xf32>
    %23 = arith.mulf %21, %22 : vector<32x256xf32>
    %24 = arith.addf %18, %23 : vector<32x256xf32>
    %cst_6 = arith.constant 0.000000e+00 : f32
    %25 = vector.broadcast %cst_6 : f32 to vector<32x256xf32>
    %26 = arith.maximumf %24, %25 : vector<32x256xf32>
    %c0_7 = arith.constant 0 : index
    %c0_8 = arith.constant 0 : index
    %c0_9 = arith.constant 0 : index
    %27 = vector.load %arg5[%c0_7, %c0_8, %c0_9] : memref<1x32x256xf32, #tpu.memory_space<vmem>>, vector<1x32x256xf32>
    %28 = vector.shape_cast %27 : vector<1x32x256xf32> to vector<32x256xf32>
    %29 = vector.shape_cast %26 : vector<32x256xf32> to vector<1x32x256xf32>
    tpu.vector_store %arg5[%c0_7, %c0_8, %c0_9], %29 {strides = array<i32>} : memref<1x32x256xf32, #tpu.memory_space<vmem>>, vector<1x32x256xf32>,
    return
  }
  func.func @transform_0(%arg0: i32, %arg1: i32) -> (i32, i32, i32) {
    %c0_i32 = arith.constant 0 : i32
    %c0_i32_0 = arith.constant 0 : i32
    return %arg1, %c0_i32, %arg0 : i32, i32, i32
  }
  func.func @transform_1(%arg0: i32, %arg1: i32) -> (i32, i32) {
    %c0_i32 = arith.constant 0 : i32
    %c0_i32_0 = arith.constant 0 : i32
    %c0_i32_1 = arith.constant 0 : i32
    return %c0_i32, %c0_i32_0 : i32, i32
  }
  func.func @transform_2(%arg0: i32, %arg1: i32) -> (i32, i32) {
    %c0_i32 = arith.constant 0 : i32
    %c0_i32_0 = arith.constant 0 : i32
    %c0_i32_1 = arith.constant 0 : i32
    return %c0_i32, %c0_i32_0 : i32, i32
  }
  func.func @transform_3(%arg0: i32, %arg1: i32) -> (i32, i32, i32) {
    %c0_i32 = arith.constant 0 : i32
    %c0_i32_0 = arith.constant 0 : i32
    return %arg1, %c0_i32, %arg0 : i32, i32, i32
  }
}

</mosaic_0001>

<llo_original>
// kernel: tpu_custom_call.1
$region0: #{tpu_custom_call.1}
  #allocation0 [shape = 'u32[]', space=smem, size = 0x4, offset = 0x4, fixed_abs, tag = 'smem constant byte address 0x4 - core index']
  #allocation1 [shape = 'u32[72,128]{1,0:T(1,128)}', space=vmem, size = 0x9000, scoped, tag = 'internal scratch']
  %s0 = inlined_call_operand.vmem [shape: f32[3,3,256], index: 0, kind: input, shape index: {}]
  %s1 = inlined_call_operand.vmem [shape: f32[32,3], index: 1, kind: input, shape index: {}]
  %s2 = inlined_call_operand.vmem [shape: f32[32,1], index: 2, kind: input, shape index: {}]
  %s3 = inlined_call_operand.hbm [shape: f32[3,32,256], index: 3, kind: output, shape index: {}]
  %s4 = sld [smem:[#allocation0]]
  $region45: #{tpu_custom_call.1} parent=0
    _
  %s6 = ssub.s32 1, %s4
  %s7 = scalar_select 0, %s6, %s4
  $region1: #{tpu_custom_call.1} parent=0
    #allocation2 [shape = 'u8[65536]{0}', space=vmem, size = 0x10000, scoped, tag = 'output window, operand 0']
    #allocation3 [shape = 's32[2]{0}', space=sflag, size = 0x8, scoped, tag = 'scoped memory for tpu_custom_call.1']
    %8 = vsyncpa [#allocation3], 0
    %s9 = scalar_lea.sflag [#allocation3], 1
    %10 = vsyncpa %s9, 0
    loop: start=0, step=1, limit=5
    $region2: #{tpu_custom_call.1} parent=1 // loop_pre_header
      _
    $region3: #{tpu_custom_call.1} parent=1 // loop_header
      %s12 = sphi 0, %s16
      %p13 = scmp.ge.s32.totalorder %s12, 5
      %s19 = sphi 0, %s31
      %s20 = sphi 0, %s27
      %s21 = sphi 0, %s19
      %s22 = sphi 0, %s20
      %s23 = sphi 0, %s21
      %s24 = sphi 0, %s22
      %s36 = sphi 0, %s38
      %s39 = sphi 0, %s36
      %s40 = sphi 0, %s39
      %s56 = sphi 0, %s40
      %s60 = sphi 0, %s60
      %s62 = sphi 0, %s60
      %s63 = sphi 0, %s62
      %s77 = sphi 0, %s63
      %s81 = sphi 0, %s81
      %s83 = sphi 0, %s81
      %s84 = sphi 0, %s83
      %s98 = sphi 0, %s84
      %s106 = sphi 0, %s108
      %s109 = sphi 0, %s106
      %s110 = sphi 0, %s109
      %s126 = sphi 0, %s110
    $region4: #{tpu_custom_call.1} parent=1 // loop_header_branch
      %15 = sbr.rel (%p13) target = $region8
    $region5: #{tpu_custom_call.1} parent=1 // loop_body
      %s17 = ssub.s32 %s12, 1
      %s18 = ssub.s32 %s12, 2
      %s25 = sadd.s32 1, %s20
      %p26 = scmp.ge.s32.totalorder %s25, 3
      %s27 = scalar_select %p26, 0, %s25
      %s28 = sadd.s32 1, %s19
      %s29 = scalar_select %p26, %s28, %s19
      %p30 = scmp.ge.s32.totalorder %s29, 1
      %s31 = scalar_select %p30, 0, %s29
      %s32 = ssub.s32 %s20, %s27
      %s33 = ssub.s32 %s19, %s31
      %s34 = sor.u32 %s32, %s33
      %p35 = scmp.eq.s32.totalorder %s34, 0
      %s37 = sadd.s32 %s36, 1
      %s38 = scalar_select %p35, %s36, %s37
      %p41 = pneg %p35
      %p42 = scmp.eq.s32.totalorder %s12, 2
      %p43 = por %p41, %p42
      %p44 = scmp.ne.s32.totalorder %s36, %s39
      %p45 = scmp.eq.s32.totalorder %s12, 0
      %p46 = por %p44, %p45
      %p47 = scmp.ne.s32.totalorder %s36, %s39
      %p48 = scmp.eq.s32.totalorder %s17, 2
      %p49 = por %p47, %p48
      %p50 = scmp.ne.s32.totalorder %s39, %s40
      %p51 = scmp.eq.s32.totalorder %s17, 0
      %p52 = por %p50, %p51
      %p53 = scmp.ne.s32.totalorder %s39, %s40
      %p54 = scmp.eq.s32.totalorder %s18, 2
      %p55 = por %p53, %p54
      %p57 = scmp.ne.s32.totalorder %s40, %s56
      %p58 = scmp.eq.s32.totalorder %s18, 0
      %p59 = por %p57, %p58
      %s61 = sadd.s32 %s60, 1
      %p64 = scmp.eq.s32.totalorder %s12, 2
      %p65 = scmp.ne.s32.totalorder %s60, %s62
      %p66 = scmp.eq.s32.totalorder %s12, 0
      %p67 = por %p65, %p66
      %p68 = scmp.ne.s32.totalorder %s60, %s62
      %p69 = scmp.eq.s32.totalorder %s17, 2
      %p70 = por %p68, %p69
      %p71 = scmp.ne.s32.totalorder %s62, %s63
      %p72 = scmp.eq.s32.totalorder %s17, 0
      %p73 = por %p71, %p72
      %p74 = scmp.ne.s32.totalorder %s62, %s63
      %p75 = scmp.eq.s32.totalorder %s18, 2
      %p76 = por %p74, %p75
      %p78 = scmp.ne.s32.totalorder %s63, %s77
      %p79 = scmp.eq.s32.totalorder %s18, 0
      %p80 = por %p78, %p79
      %s82 = sadd.s32 %s81, 1
      %p85 = scmp.eq.s32.totalorder %s12, 2
      %p86 = scmp.ne.s32.totalorder %s81, %s83
      %p87 = scmp.eq.s32.totalorder %s12, 0
      %p88 = por %p86, %p87
      %p89 = scmp.ne.s32.totalorder %s81, %s83
      %p90 = scmp.eq.s32.totalorder %s17, 2
      %p91 = por %p89, %p90
      %p92 = scmp.ne.s32.totalorder %s83, %s84
      %p93 = scmp.eq.s32.totalorder %s17, 0
      %p94 = por %p92, %p93
      %p95 = scmp.ne.s32.totalorder %s83, %s84
      %p96 = scmp.eq.s32.totalorder %s18, 2
      %p97 = por %p95, %p96
      %p99 = scmp.ne.s32.totalorder %s84, %s98
      %p100 = scmp.eq.s32.totalorder %s18, 0
      %p101 = por %p99, %p100
      %s102 = ssub.s32 %s20, %s27
      %s103 = ssub.s32 %s19, %s31
      %s104 = sor.u32 %s102, %s103
      %p105 = scmp.eq.s32.totalorder %s104, 0
      %s107 = sadd.s32 %s106, 1
      %s108 = scalar_select %p105, %s106, %s107
      %p111 = pneg %p105
      %p112 = scmp.eq.s32.totalorder %s12, 2
      %p113 = por %p111, %p112
      %p114 = scmp.ne.s32.totalorder %s106, %s109
      %p115 = scmp.eq.s32.totalorder %s12, 0
      %p116 = por %p114, %p115
      %p117 = scmp.ne.s32.totalorder %s106, %s109
      %p118 = scmp.eq.s32.totalorder %s17, 2
      %p119 = por %p117, %p118
      %p120 = scmp.ne.s32.totalorder %s109, %s110
      %p121 = scmp.eq.s32.totalorder %s17, 0
      %p122 = por %p120, %p121
      %p123 = scmp.ne.s32.totalorder %s109, %s110
      %p124 = scmp.eq.s32.totalorder %s18, 2
      %p125 = por %p123, %p124
      %p127 = scmp.ne.s32.totalorder %s110, %s126
      %p128 = scmp.eq.s32.totalorder %s18, 0
      %p129 = por %p127, %p128
      %p130 = scmp.le.s32.totalorder 1, %s12
      %p131 = scmp.lt.s32.totalorder %s12, 4
      %p132 = pnand %p130, %p131
      %p133 = pneg %p132
      // Predicated region
      $region9: #{tpu_custom_call.1} parent=5 // pred_check
        _
      $region10: #{tpu_custom_call.1} parent=5 // pred_check_branch
        %135 = sbr.rel (%p132) target = $region12
      $region11: #{tpu_custom_call.1} parent=5 // pred_region
        %s136 = ssub.s32 %s12, 1
        // Predicated region
        $region13: #{tpu_custom_call.1} parent=11 // pred_check
          %p137 = pneg %p73
        $region14: #{tpu_custom_call.1} parent=11 // pred_check_branch
          %139 = sbr.rel (%p137) target = $region16
        $region15: #{tpu_custom_call.1} parent=11 // pred_region
          _
        $region16: #{tpu_custom_call.1} parent=11 // pred_fallthru
          _
        // Predicated region
        $region17: #{tpu_custom_call.1} parent=11 // pred_check
          %p140 = pneg %p94
        $region18: #{tpu_custom_call.1} parent=11 // pred_check_branch
          %142 = sbr.rel (%p140) target = $region20
        $region19: #{tpu_custom_call.1} parent=11 // pred_region
          _
        $region20: #{tpu_custom_call.1} parent=11 // pred_fallthru
          _
      $region12: #{tpu_custom_call.1} parent=5 // pred_fallthru
        _
      %p143 = scmp.lt.s32.totalorder %s12, 3
      // Predicated region
      $region21: #{tpu_custom_call.1} parent=5 // pred_check
        %p144 = pneg %p143
      $region22: #{tpu_custom_call.1} parent=5 // pred_check_branch
        %146 = sbr.rel (%p144) target = $region24
      $region23: #{tpu_custom_call.1} parent=5 // pred_region
        // Predicated region
        $region25: #{tpu_custom_call.1} parent=23 // pred_check
          %p147 = pneg %p46
        $region26: #{tpu_custom_call.1} parent=23 // pred_check_branch
          %149 = sbr.rel (%p147) target = $region28
        $region27: #{tpu_custom_call.1} parent=23 // pred_region
          %s150 = smul.u32 2, %s19
          %p151 = scmp.lt.s32.totalorder %s20, 2
          %s152 = scalar_select %p151, %s20, 2
          %p153 = scmp.lt.s32.totalorder %s150, 1
          %s154 = scalar_select %p153, %s150, 1
          %s155 = smul.addr %s152, 2
          %s156 = sadd.s32 %s154, %s155
          %s157 = smul.addr %s156, 4
          %s158 = scalar_lea.vmem %s0, %s157
          %s159 = smul.u32 2, %s19
        $region28: #{tpu_custom_call.1} parent=23 // pred_fallthru
          _
      $region24: #{tpu_custom_call.1} parent=5 // pred_fallthru
        _
      %p160 = scmp.le.s32.totalorder 1, %s12
      %p161 = scmp.lt.s32.totalorder %s12, 4
      %p162 = pnand %p160, %p161
      %p163 = pneg %p162
      // Predicated region
      $region29: #{tpu_custom_call.1} parent=5 // pred_check
        _
      $region30: #{tpu_custom_call.1} parent=5 // pred_check_branch
        %165 = sbr.rel (%p162) target = $region32
      $region31: #{tpu_custom_call.1} parent=5 // pred_region
        %s166 = ssub.s32 %s12, 1
        %s167 = smul.u32 2, %s21
        %p168 = scmp.lt.s32.totalorder %s22, 2
        %s169 = scalar_select %p168, %s22, 2
        %p170 = scmp.lt.s32.totalorder %s167, 1
        %s171 = scalar_select %p170, %s167, 1
        %s172 = smul.addr %s169, 2
        %s173 = sadd.s32 %s171, %s172
        %s174 = smul.addr %s173, 4
        %s175 = scalar_lea.vmem %s0, %s174
        %p176 = pneg %p52
        %p177 = pneg %p49
        %p178 = pneg %p73
        %p179 = pneg %p70
        %p180 = pneg %p94
        %p181 = pneg %p91
        %p182 = pneg %p122
        %p183 = pneg %p119
        %s184 = sand.u32 %s109, 1
        %s185 = scalar_lea.sflag [#allocation3], %s184
        %s186 = sand.u32 %s109, 1
        %s187 = smul.addr %s186, 64
        %s188 = scalar_lea.vmem [#allocation2], %s187
        %s189 = smul.u32 2, %s21
        %p190 = scmp.lt.s32.totalorder %s22, 2
        %s191 = scalar_select %p190, %s22, 2
        %p192 = scmp.lt.s32.totalorder %s189, 1
        %s193 = scalar_select %p192, %s189, 1
        %s194 = smul.addr %s191, 2
        %s195 = sadd.s32 %s193, %s194
        %s196 = smul.addr %s195, 4
        %s197 = scalar_lea.vmem %s0, %s196
        %s198 = smul.u32 2, %s21
        %s199 = smul.u32 2, %s21
        %v200 = vld [vmem:[%s197] sm:$0x77]
        %v201 = vld [vmem:[%s1] sm:$0xff]
        %v202 = vld [vmem:[%s1 + $0x8] sm:$0xff]
        %v203 = vld [vmem:[%s1 + $0x10] sm:$0xff]
        %v204 = vld [vmem:[%s1 + $0x18] sm:$0xff]
        %v205 = vld [vmem:[%s2] sm:$0xff]
        %v206 = vld [vmem:[%s2 + $0x8] sm:$0xff]
        %v207 = vld [vmem:[%s2 + $0x10] sm:$0xff]
        %v208 = vld [vmem:[%s2 + $0x18] sm:$0xff]
        %210 = vset.pattern.permute.xlu0 0
        %211 = vperm.xlu0 %210, %v205
        %v212 = vpop.permute.xlu0 %211
        %215 = vset.pattern.permute.xlu0 0
        %216 = vperm.xlu0 %215, %v206
        %v217 = vpop.permute.xlu0 %216
        %220 = vset.pattern.permute.xlu0 0
        %221 = vperm.xlu0 %220, %v207
        %v222 = vpop.permute.xlu0 %221
        %225 = vset.pattern.permute.xlu0 0
        %226 = vperm.xlu0 %225, %v208
        %v227 = vpop.permute.xlu0 %226
        %v229 = vadd.f32 %v212, 0.0
        %v230 = vadd.f32 %v217, 0.0
        %v231 = vadd.f32 %v222, 0.0
        %v232 = vadd.f32 %v227, 0.0
        %234 = vset.pattern.permute.xlu0 0
        %235 = vperm.xlu0 %234, %v201
        %v236 = vpop.permute.xlu0 %235
        %239 = vset.pattern.permute.xlu0 0
        %240 = vperm.xlu0 %239, %v202
        %v241 = vpop.permute.xlu0 %240
        %244 = vset.pattern.permute.xlu0 0
        %245 = vperm.xlu0 %244, %v203
        %v246 = vpop.permute.xlu0 %245
        %249 = vset.pattern.permute.xlu0 0
        %250 = vperm.xlu0 %249, %v204
        %v251 = vpop.permute.xlu0 %250
        %v254 = vperm.slane %v200, 0
        %v255 = vperm.slane %v200, 4
        %v258 = vperm.slane %v254, 0
        %v259 = vperm.slane %v255, 0
        %v260 = vmul.f32 %v236, %v258
        %v261 = vmul.f32 %v236, %v259
        %v262 = vmul.f32 %v241, %v258
        %v263 = vmul.f32 %v241, %v259
        %v264 = vmul.f32 %v246, %v258
        %v265 = vmul.f32 %v246, %v259
        %v266 = vmul.f32 %v251, %v258
        %v267 = vmul.f32 %v251, %v259
        %v268 = vadd.f32 %v229, %v260
        %v269 = vadd.f32 %v229, %v261
        %v270 = vadd.f32 %v230, %v262
        %v271 = vadd.f32 %v230, %v263
        %v272 = vadd.f32 %v231, %v264
        %v273 = vadd.f32 %v231, %v265
        %v274 = vadd.f32 %v232, %v266
        %v275 = vadd.f32 %v232, %v267
        %276 = vset.pattern.permute.xlu0 1
        %277 = vperm.xlu0 %276, %v201
        %v278 = vpop.permute.xlu0 %277
        %280 = vset.pattern.permute.xlu0 1
        %281 = vperm.xlu0 %280, %v202
        %v282 = vpop.permute.xlu0 %281
        %284 = vset.pattern.permute.xlu0 1
        %285 = vperm.xlu0 %284, %v203
        %v286 = vpop.permute.xlu0 %285
        %288 = vset.pattern.permute.xlu0 1
        %289 = vperm.xlu0 %288, %v204
        %v290 = vpop.permute.xlu0 %289
        %v292 = vperm.slane %v200, 1
        %v293 = vperm.slane %v200, 5
        %v296 = vperm.slane %v292, 1
        %v297 = vperm.slane %v293, 1
        %v298 = vmul.f32 %v278, %v296
        %v299 = vmul.f32 %v278, %v297
        %v300 = vmul.f32 %v282, %v296
        %v301 = vmul.f32 %v282, %v297
        %v302 = vmul.f32 %v286, %v296
        %v303 = vmul.f32 %v286, %v297
        %v304 = vmul.f32 %v290, %v296
        %v305 = vmul.f32 %v290, %v297
        %v306 = vadd.f32 %v268, %v298
        %v307 = vadd.f32 %v269, %v299
        %v308 = vadd.f32 %v270, %v300
        %v309 = vadd.f32 %v271, %v301
        %v310 = vadd.f32 %v272, %v302
        %v311 = vadd.f32 %v273, %v303
        %v312 = vadd.f32 %v274, %v304
        %v313 = vadd.f32 %v275, %v305
        %314 = vset.pattern.permute.xlu0 2
        %315 = vperm.xlu0 %314, %v201
        %v316 = vpop.permute.xlu0 %315
        %318 = vset.pattern.permute.xlu0 2
        %319 = vperm.xlu0 %318, %v202
        %v320 = vpop.permute.xlu0 %319
        %322 = vset.pattern.permute.xlu0 2
        %323 = vperm.xlu0 %322, %v203
        %v324 = vpop.permute.xlu0 %323
        %326 = vset.pattern.permute.xlu0 2
        %327 = vperm.xlu0 %326, %v204
        %v328 = vpop.permute.xlu0 %327
        %v330 = vperm.slane %v200, 2
        %v331 = vperm.slane %v200, 6
        %v334 = vperm.slane %v330, 2
        %v335 = vperm.slane %v331, 2
        %v336 = vmul.f32 %v316, %v334
        %v337 = vmul.f32 %v316, %v335
        %v338 = vmul.f32 %v320, %v334
        %v339 = vmul.f32 %v320, %v335
        %v340 = vmul.f32 %v324, %v334
        %v341 = vmul.f32 %v324, %v335
        %v342 = vmul.f32 %v328, %v334
        %v343 = vmul.f32 %v328, %v335
        %v344 = vadd.f32 %v306, %v336
        %v345 = vadd.f32 %v307, %v337
        %v346 = vadd.f32 %v308, %v338
        %v347 = vadd.f32 %v309, %v339
        %v348 = vadd.f32 %v310, %v340
        %v349 = vadd.f32 %v311, %v341
        %v350 = vadd.f32 %v312, %v342
        %v351 = vadd.f32 %v313, %v343
        %v352 = vmax.f32 %v344, 0.0
        %v353 = vmax.f32 %v345, 0.0
        %v354 = vmax.f32 %v346, 0.0
        %v355 = vmax.f32 %v347, 0.0
        %v356 = vmax.f32 %v348, 0.0
        %v357 = vmax.f32 %v349, 0.0
        %v358 = vmax.f32 %v350, 0.0
        %v359 = vmax.f32 %v351, 0.0
        %360 = vst [vmem:[%s188] sm:$0xff] %v352
        %361 = vst [vmem:[%s188 + $0x8] sm:$0xff] %v353
        %362 = vst [vmem:[%s188 + $0x10] sm:$0xff] %v354
        %363 = vst [vmem:[%s188 + $0x18] sm:$0xff] %v355
        %364 = vst [vmem:[%s188 + $0x20] sm:$0xff] %v356
        %365 = vst [vmem:[%s188 + $0x28] sm:$0xff] %v357
        %366 = vst [vmem:[%s188 + $0x30] sm:$0xff] %v358
        %367 = vst [vmem:[%s188 + $0x38] sm:$0xff] %v359
        %s368 = sand.u32 %s109, 1
        %s369 = scalar_lea.sflag [#allocation3], %s368
        %s370 = sand.u32 %s109, 1
        %s371 = smul.addr %s370, 64
        %s372 = scalar_lea.vmem [#allocation2], %s371
        // Predicated region
        $region33: #{tpu_custom_call.1} parent=31 // pred_check
          %p373 = pneg %p119
        $region34: #{tpu_custom_call.1} parent=31 // pred_check_branch
          %375 = sbr.rel (%p373) target = $region36
        $region35: #{tpu_custom_call.1} parent=31 // pred_region
          %s376 = smul.u32 2, %s21
          %378 = vsyncadd %s369, 0
          %s379 = smul.addr %s22, 8
          %s380 = sadd.s32 %s376, %s379
          %s381 = smul.addr %s380, 8
          %s382 = scalar_lea.hbm %s3, %s381
          %s383 = sshll.u32 %s372, 4
          %s384 = int_to_ptr.vmem [resolvable:$true] %s383
          %s385 = sshll.u32 %s382, 4
          %s386 = int_to_ptr.hbm [resolvable:$true] %s385
          %391 = dma.vmem_to_hbm [thread:$0]  %s384, 1024, %s386, %s369, 256, 256, 16
        $region36: #{tpu_custom_call.1} parent=31 // pred_fallthru
          _
      $region32: #{tpu_custom_call.1} parent=5 // pred_fallthru
        _
      %p392 = scmp.le.s32.totalorder 2, %s12
      // Predicated region
      $region37: #{tpu_custom_call.1} parent=5 // pred_check
        %p393 = pneg %p392
      $region38: #{tpu_custom_call.1} parent=5 // pred_check_branch
        %395 = sbr.rel (%p393) target = $region40
      $region39: #{tpu_custom_call.1} parent=5 // pred_region
        %s396 = ssub.s32 %s12, 2
        // Predicated region
        $region41: #{tpu_custom_call.1} parent=39 // pred_check
          %p397 = pneg %p125
        $region42: #{tpu_custom_call.1} parent=39 // pred_check_branch
          %399 = sbr.rel (%p397) target = $region44
        $region43: #{tpu_custom_call.1} parent=39 // pred_region
          %s400 = sand.u32 %s110, 1
          %s401 = scalar_lea.sflag [#allocation3], %s400
          %s402 = sand.u32 %s110, 1
          %s403 = smul.addr %s402, 64
          %s404 = scalar_lea.vmem [#allocation2], %s403
          %406 = dma.done %s401, 1024
        $region44: #{tpu_custom_call.1} parent=39 // pred_fallthru
          _
      $region40: #{tpu_custom_call.1} parent=5 // pred_fallthru
        _
    $region6: #{tpu_custom_call.1} parent=1 // loop_footer
      %s16 = sadd.s32 1, %s12
    $region7: #{tpu_custom_call.1} parent=1 // loop_footer_branch
      %11 = sbr.rel target = $region3
    $region8: #{tpu_custom_call.1} parent=1 // loop_exit
      _
    %407 = vsyncpa [#allocation3], 1
    %s408 = scalar_lea.sflag [#allocation3], 1
    %409 = vsyncpa %s408, 1

</llo_original>
